<compile_context>
chip_gen: v7x
topology: tpu7x:2x2x1
jax: 0.10.0
libtpu: 0.0.40
codegen_flags: <defaults>
</compile_context>

<pallas_src>
import functools

import jax
import jax.numpy as jnp
from jax.experimental import pallas as pl
from jax.experimental.pallas import tpu as pltpu


def l2normalize(v, eps=1e-12):
    return v / (jnp.linalg.norm(v) + eps)


# ---------------------------------------------------------------------------
# Runtime probe: determine pltpu.roll's rotation direction on this backend.
# The result is asserted (no silent fallback path).
# ---------------------------------------------------------------------------
def _probe_roll_semantics():
    """+1 if pltpu.roll matches jnp.roll (out[i] = x[(i - shift) % N]),
    -1 if it rotates the other way, 0 if the probe is inconclusive."""

    def k(x_ref, o_ref):
        o_ref[...] = pltpu.roll(x_ref[...], 1, 1)

    x = jax.lax.broadcasted_iota(jnp.float32, (8, 128), 1)
    y = pl.pallas_call(
        k, out_shape=jax.ShapeDtypeStruct((8, 128), jnp.float32))(x)
    y00 = float(jax.block_until_ready(y)[0, 0])
    if y00 == 127.0:
        return 1
    if y00 == 1.0:
        return -1
    return 0


# ---------------------------------------------------------------------------
# Pallas kernel: one grid step == Bt images (fully fused forward pass)
# ---------------------------------------------------------------------------
def ssa_kernel(roll_sign, bt, hw, seg,
               x_ref, wfgh_ref, bfgh_ref, wv_ref, bv_ref, kwI_ref, masks_ref,
               kb_ref, out_ref):
    bthw = bt * hw
    x_bf = x_ref[0]                                            # (C, Bt*HW) bf16

    # Fused f/g/h 1x1 convs (eval-mode BN folded), all Bt images in ONE matmul:
    # bf16 operands on the MXU, f32 accumulation, f32 bias / elementwise math.
    fgh = (jnp.dot(wfgh_ref[...], x_bf, preferred_element_type=jnp.float32)
           + bfgh_ref[...])                                    # (3*seg, Bt*HW) f32
    f = jnp.maximum(fgh[0:seg, :], 0.0)
    g = jnp.maximum(fgh[seg:2 * seg, :], 0.0)
    h = fgh[2 * seg:3 * seg, :]

    # Precomputed per-image boundary masks (hoisted; no in-kernel iotas).
    mask_m = masks_ref[0:1, :]          # zero where lane % HW == 0       (d = -1)
    mask_p = masks_ref[1:2, :]          # zero where lane % HW == HW - 1  (d = +1)

    def shift(a, d):
        # out[:, n] = a[:, n + d] within each HW segment (zero at the image
        # boundary); the lane rotation wraps across images, the mask kills it.
        r = pltpu.roll(a, (-roll_sign * d) % bthw, 1)          # XLU lane rotate
        return r * (mask_p if d > 0 else mask_m)

    # Stacks [shift(-1); identity; shift(+1)] so the gram and z2 stages are each
    # a single matmul per image.
    f_stack = jnp.concatenate([shift(f, -1), f, shift(f, 1)],
                              axis=0).astype(jnp.bfloat16)     # (3*seg, Bt*HW)
    g_stack = jnp.concatenate([shift(g, -1), g, shift(g, 1)],
                              axis=0).astype(jnp.bfloat16)     # (3*seg, Bt*HW)
    h_bf = h.astype(jnp.bfloat16)

    wv = wv_ref[...]                                           # (C, seg)       f32
    bv = bv_ref[...]                                           # (C, 1)         f32
    kwI = kwI_ref[...]                                         # (3seg, 3seg)   f32 = kron(kw^T, I)
    kb = kb_ref[0]

    # Per-image gram / attention stage: the (HW,HW) attention map is never built.
    # Short unrolled loop (weights differ per image -> cannot fuse across images).
    outs = []
    for b in range(bt):
        lo = b * hw                                            # HW % 128 == 0 -> aligned lane slices
        hb = h_bf[:, lo:lo + hw]                               # (seg,  HW)
        gb = g_stack[:, lo:lo + hw]                            # (3seg, HW)
        fb = f_stack[:, lo:lo + hw]                            # (3seg, HW)

        # gram[:, q*seg:(q+1)*seg] = h @ shift(g, q-1)^T  -- one NT matmul, K=HW
        gram = jax.lax.dot_general(hb, gb, (((1,), (1,)), ((), ())),
                                   preferred_element_type=jnp.float32)   # (seg, 3seg)
        # K_cat = [K_-1 | K_0 | K_+1] = gram @ kron(kw^T, I);  M_cat = wv @ K_cat
        m_cat = jnp.dot(wv,
                        jnp.dot(gram, kwI, preferred_element_type=jnp.float32),
                        preferred_element_type=jnp.float32)               # (C, 3seg)

        hsum = jnp.sum(h[:, lo:lo + hw], axis=1, keepdims=True)           # (seg, 1) f32
        # wv @ z2 = M_cat @ [f_-1; f_0; f_+1]  +  kb * (wv @ rowsum(h))
        z = jnp.dot(m_cat.astype(jnp.bfloat16), fb,
                    preferred_element_type=jnp.float32)                   # (C, HW)
        z = z + kb * jnp.dot(wv, hsum, preferred_element_type=jnp.float32) + bv
        outs.append(z + x_bf[:, lo:lo + hw].astype(jnp.float32))          # residual

    # Single lane-dense (C, Bt*HW) store.
    out_ref[0] = jnp.concatenate(outs, axis=1)


# ---------------------------------------------------------------------------
# Wrapper: layout plumbing + pallas_call
# ---------------------------------------------------------------------------
def ssa_forward(x_nchw, p, roll_sign, bt_target=8):
    B, C, H, W = x_nchw.shape
    HW = H * W

    seg3 = p["w_fgh"].shape[0]
    seg = seg3 // 3

    # --- batch blocking -------------------------------------------------------
    bt = max(1, min(bt_target, B))
    if HW % 128 != 0:
        bt = 1                             # keep per-image lane slices 128-aligned
    if B >= 2:
        bt = min(bt, pl.cdiv(B, 2))        # >= 2 grid steps so both v7x TCs get work
    Bp = pl.cdiv(B, bt) * bt
    nblk = Bp // bt

    x_cm = x_nchw.reshape(B, C, HW)
    if Bp != B:
        x_cm = jnp.concatenate(
            [x_cm, jnp.zeros((Bp - B, C, HW), x_cm.dtype)], axis=0)

    # Channel-major blocks with batch riding the lane axis: (nblk, C, Bt*HW).
    # XLA fuses this transpose with the f32->bf16 cast (one layout pass), and in
    # exchange every kernel matmul / store is Bt*HW lanes wide.
    x_blk = (x_cm.reshape(nblk, bt, C, HW)
                 .transpose(0, 2, 1, 3)
                 .reshape(nblk, C, bt * HW)
                 .astype(jnp.bfloat16))

    # Per-image boundary masks for the +-1 pixel shifts (hoisted out of kernel).
    lane_mod = jnp.arange(bt * HW, dtype=jnp.int32) % HW
    masks = jnp.stack([(lane_mod != 0).astype(jnp.float32),        # d = -1
                       (lane_mod != HW - 1).astype(jnp.float32)],  # d = +1
                      axis=0)                                      # (2, Bt*HW)

    def full_spec(shape):
        return pl.BlockSpec(shape, lambda i: (0,) * len(shape))

    grid_spec = pltpu.PrefetchScalarGridSpec(
        num_scalar_prefetch=0,
        grid=(nblk,),
        in_specs=[
            pl.BlockSpec((1, C, bt * HW), lambda i: (i, 0, 0)),    # x (bf16)
            full_spec((seg3, C)),                                  # fused f/g/h W (bf16)
            full_spec((seg3, 1)),                                  # fused f/g/h bias (f32)
            full_spec((C, seg)),                                   # v weight (f32)
            full_spec((C, 1)),                                     # v bias (f32)
            full_spec((seg3, seg3)),                               # kron(kw^T, I) (f32)
            full_spec((2, bt * HW)),                               # shift masks (f32)
            pl.BlockSpec(memory_space=pltpu.MemorySpace.SMEM),     # kb (1,)
        ],
        out_specs=pl.BlockSpec((1, C, bt * HW), lambda i: (i, 0, 0)),
    )

    # Working set is O(seg * Bt * HW); 32 MiB == the default scoped budget on
    # v7x (64 MiB/TC) and leaves double-buffering headroom on v5e/v6e (128 MiB).
    out_blk = pl.pallas_call(
        functools.partial(ssa_kernel, roll_sign, bt, HW, seg),
        out_shape=jax.ShapeDtypeStruct((nblk, C, bt * HW), jnp.float32),
        grid_spec=grid_spec,
        compiler_params=pltpu.CompilerParams(
            dimension_semantics=("parallel",),     # megacore: one block per core
            vmem_limit_bytes=32 * 1024 * 1024),
    )(x_blk, p["w_fgh"].astype(jnp.bfloat16), p["b_fgh"], p["wv_eff"],
      p["bv_eff"], p["kwI"], masks, p["kb"])

    out = (out_blk.reshape(nblk, C, bt, HW)
                  .transpose(0, 2, 1, 3)
                  .reshape(Bp, C, HW)[:B]
                  .reshape(B, C, H, W))
    return out


# ---------------------------------------------------------------------------
# Deterministic parameter construction (module __init__ shapes)
# ---------------------------------------------------------------------------
def init_params(key, in_ch, k, k_size=3):
    # TODO(synk): SpectralNorm's power iteration (a 1x9 matvec) and eval-mode BN
    # folding are scalar-sized parameter prep done here in plain JAX, not in-kernel.
    mid = in_ch // k
    seg = ((mid + 7) // 8) * 8      # pad each projection to a sublane multiple
    ks = jax.random.split(key, 8)
    std = (2.0 / in_ch) ** 0.5      # kaiming_normal fan_in for a 1x1 conv

    Wf = jax.random.normal(ks[0], (mid, in_ch), jnp.float32) * std
    Wg = jax.random.normal(ks[1], (mid, in_ch), jnp.float32) * std
    Wh = jax.random.normal(ks[2], (mid, in_ch), jnp.float32) * std
    bf = jnp.zeros((mid,), jnp.float32)
    bg = jnp.zeros((mid,), jnp.float32)
    bh = jnp.zeros((mid,), jnp.float32)

    # self.v would be constant_init (all zeros) -> small random init instead
    Wv = jax.random.normal(ks[3], (in_ch, mid), jnp.float32) * 0.05
    bv = jax.random.normal(ks[4], (in_ch,), jnp.float32) * 0.05

    # SpectralNorm(Conv2d(1, 1, 3, padding=1)), power_iterations=1
    w_raw = jax.random.normal(ks[5], (k_size, k_size), jnp.float32) * 0.3
    kb = jax.random.normal(ks[6], (1,), jnp.float32) * 0.1
    u = l2normalize(jax.random.normal(ks[7], (1,), jnp.float32))
    w_mat = w_raw.reshape(1, -1)
    v = l2normalize(w_mat.T @ u)
    u = l2normalize(w_mat @ v)
    sigma = jnp.dot(u, w_mat @ v)
    kw = w_raw / sigma

    raw = dict(Wf=Wf, bf=bf, Wg=Wg, bg=bg, Wh=Wh, bh=bh, Wv=Wv, bv=bv, kw=kw, kb=kb)

    # eval-mode BatchNorm (gamma=1, beta=0, mean=0, var=1, eps=1e-5) folded in
    s = 1.0 / jnp.sqrt(1.0 + 1e-5)

    def pad_seg(w, b, scale):
        wp = jnp.zeros((seg, in_ch), jnp.float32).at[:mid].set(w * scale)
        bp = jnp.zeros((seg, 1), jnp.float32).at[:mid, 0].set(b * scale)
        return wp, bp

    wf_p, bf_p = pad_seg(Wf, bf, s)
    wg_p, bg_p = pad_seg(Wg, bg, s)
    wh_p, bh_p = pad_seg(Wh, bh, 1.0)

    folded = dict(
        w_fgh=jnp.concatenate([wf_p, wg_p, wh_p], axis=0),                 # (3*seg, C)
        b_fgh=jnp.concatenate([bf_p, bg_p, bh_p], axis=0),                 # (3*seg, 1)
        wv_eff=jnp.zeros((in_ch, seg), jnp.float32).at[:, :mid].set(Wv),   # (C, seg)
        bv_eff=bv.reshape(in_ch, 1),                                       # (C, 1)
        # K_cat = gram @ kron(kw^T, I_seg): folds the 3x3 spectral-conv weights
        # into a single tiny in-kernel matmul (no per-p scalar mixing).
        kwI=jnp.kron(kw.T, jnp.eye(seg, dtype=jnp.float32)),               # (3seg, 3seg)
        kb=kb,
    )
    return raw, folded


# ---------------------------------------------------------------------------
# Pure-JAX reference (mirrors the PyTorch forward, eval-mode BN)
# ---------------------------------------------------------------------------
def ssa_reference(x, p):
    B, C, H, W = x.shape
    HW = H * W
    s = 1.0 / jnp.sqrt(1.0 + 1e-5)

    def conv1x1(t, w, b):
        return jnp.einsum("bchw,oc->bohw", t, w) + b[None, :, None, None]

    f = jax.nn.relu(conv1x1(x, p["Wf"], p["bf"]) * s)
    g = jax.nn.relu(conv1x1(x, p["Wg"], p["bg"]) * s)
    h = conv1x1(x, p["Wh"], p["bh"])
    f_x = f.reshape(B, -1, HW)
    g_x = g.reshape(B, -1, HW)
    h_x = h.reshape(B, -1, HW)

    z = jnp.einsum("bcn,bcm->bnm", f_x, g_x)
    attn = jax.lax.conv_general_dilated(
        z[:, None, :, :], p["kw"][None, None, :, :],
        window_strides=(1, 1), padding=((1, 1), (1, 1)),
        dimension_numbers=("NCHW", "OIHW", "NCHW"))[:, 0] + p["kb"][0]

    z2 = jnp.einsum("bnm,bcm->bnc", attn, h_x)
    z2 = jnp.transpose(z2, (0, 2, 1)).reshape(B, -1, H, W)
    return conv1x1(z2, p["Wv"], p["bv"]) + x


if __name__ == "__main__":
    key = jax.random.PRNGKey(0)
    k_x, k_p = jax.random.split(key)

    B, C, H, W = 4, 8, 16, 16   # in_ch=8, k=2 -> mid_ch=4, HW=256, Bt=2, grid=(2,)
    k_reduce = 2

    x = jax.random.normal(k_x, (B, C, H, W), jnp.float32)
    raw, folded = init_params(k_p, C, k_reduce)

    roll_sign = _probe_roll_semantics()
    assert roll_sign != 0, "pltpu.roll direction probe inconclusive on this backend"

    out = jax.block_until_ready(ssa_forward(x, folded, roll_sign))

    with jax.default_matmul_precision("highest"):
        ref = jax.block_until_ready(ssa_reference(x, raw))

    assert out.shape == x.shape
    # 5e-2 documents the deliberate bf16-operand MXU path vs. the f32 "highest"
    # precision reference.
    rel_err = float(jnp.max(jnp.abs(out - ref)) / (jnp.max(jnp.abs(ref)) + 1e-6))
    assert rel_err < 5e-2, f"kernel/reference mismatch: rel_err={rel_err}"
    print("KERNEL_OK")
</pallas_src>

<mosaic_0001>
module attributes {stable_mosaic.version = 11 : i64} {
  func.func @k(%arg0: memref<8x128xf32, #tpu.memory_space<vmem>>, %arg1: memref<8x128xf32, #tpu.memory_space<vmem>>) attributes {dimension_semantics = [], scalar_prefetch = 0 : i64, scratch_operands = 0 : i64, tpu.core_type = #tpu.core_type<tc>} {
    %c0 = arith.constant 0 : index
    %c0_0 = arith.constant 0 : index
    %0 = vector.load %arg0[%c0, %c0_0] : memref<8x128xf32, #tpu.memory_space<vmem>>, vector<8x128xf32>
    %c1_i32 = arith.constant 1 : i32
    %1 = tpu.dynamic_rotate %0 by %c1_i32 dim 1 : vector<8x128xf32>, i32 -> vector<8x128xf32>
    %c0_1 = arith.constant 0 : index
    %c0_2 = arith.constant 0 : index
    %2 = vector.load %arg1[%c0_1, %c0_2] : memref<8x128xf32, #tpu.memory_space<vmem>>, vector<8x128xf32>
    tpu.vector_store %arg1[%c0_1, %c0_2], %1 {strides = array<i32>} : memref<8x128xf32, #tpu.memory_space<vmem>>, vector<8x128xf32>,
    return
  }
}

</mosaic_0001>

<llo_original>
// kernel: tpu_custom_call.1
$region0: #{tpu_custom_call.1}
  #allocation0 [shape = 'u32[]', space=smem, size = 0x4, offset = 0x4, fixed_abs, tag = 'smem constant byte address 0x4 - core index']
  #allocation1 [shape = 'u32[144,128]{1,0:T(1,128)}', space=vmem, size = 0x12000, scoped, tag = 'internal scratch']
  %s0 = inlined_call_operand.hbm [shape: f32[8,128], index: 0, kind: input, shape index: {}]
  %s1 = inlined_call_operand.hbm [shape: f32[8,128], index: 1, kind: output, shape index: {}]
  %s2 = sld [smem:[#allocation0]]
  $region18: #{tpu_custom_call.1} parent=0
    _
  %s4 = ssub.s32 1, %s2
  %s5 = scalar_select 0, %s4, %s2
  $region1: #{tpu_custom_call.1} parent=0
    #allocation2 [shape = 'u8[4096]{0}', space=vmem, size = 0x1000, scoped, tag = 'input window, operand 0, single buffered']
    #allocation3 [shape = 's32[1]{0}', space=sflag, size = 0x4, scoped, tag = 'scoped memory for tpu_custom_call.1']
    #allocation4 [shape = 's32[1]{0}', space=sflag, size = 0x4, scoped, tag = 'scoped memory for tpu_custom_call.1']
    #allocation5 [shape = 'u8[4096]{0}', space=vmem, size = 0x1000, scoped, tag = 'output window, operand 0, single buffered']
    %6 = vsyncpa [#allocation3], 0
    %7 = vsyncpa [#allocation4], 0
    // Predicated region
    $region2: #{tpu_custom_call.1} parent=1 // pred_check
      _
    $region3: #{tpu_custom_call.1} parent=1 // pred_check_branch
      %9 = sbr.rel (0) target = $region5
    $region4: #{tpu_custom_call.1} parent=1 // pred_region
      %s11 = ssub.s32 128, 128
      %12 = vsyncadd [#allocation3], %s11
      %s14 = sshll.u32 [#allocation2], 4
      %s15 = int_to_ptr.vmem [resolvable:$true] %s14
      %17 = dma.hbm_to_vmem [thread:$0]  %s0, 128, %s15, [#allocation3]
    $region5: #{tpu_custom_call.1} parent=1 // pred_fallthru
      _
    // Predicated region
    $region6: #{tpu_custom_call.1} parent=1 // pred_check
      _
    $region7: #{tpu_custom_call.1} parent=1 // pred_check_branch
      %19 = sbr.rel (0) target = $region9
    $region8: #{tpu_custom_call.1} parent=1 // pred_region
      %20 = dma.done [#allocation3], 128
    $region9: #{tpu_custom_call.1} parent=1 // pred_fallthru
      _
    %v21 = vld [vmem:[#allocation2] sm:$0xff]
    %22 = vrot.lane.b32.xlu0 %v21, 1
    %v23 = vpop.permute.xlu0 %22
    %24 = vst [vmem:[#allocation5] sm:$0xff] %v23
    // Predicated region
    $region10: #{tpu_custom_call.1} parent=1 // pred_check
      _
    $region11: #{tpu_custom_call.1} parent=1 // pred_check_branch
      %26 = sbr.rel (0) target = $region13
    $region12: #{tpu_custom_call.1} parent=1 // pred_region
      %s28 = ssub.s32 128, 128
      %29 = vsyncadd [#allocation4], %s28
      %s31 = sshll.u32 [#allocation5], 4
      %s32 = int_to_ptr.vmem [resolvable:$true] %s31
      %34 = dma.vmem_to_hbm [thread:$0]  %s32, 128, %s1, [#allocation4]
    $region13: #{tpu_custom_call.1} parent=1 // pred_fallthru
      _
    // Predicated region
    $region14: #{tpu_custom_call.1} parent=1 // pred_check
      _
    $region15: #{tpu_custom_call.1} parent=1 // pred_check_branch
      %36 = sbr.rel (0) target = $region17
    $region16: #{tpu_custom_call.1} parent=1 // pred_region
      %37 = dma.done [#allocation4], 128
    $region17: #{tpu_custom_call.1} parent=1 // pred_fallthru
      _
    %38 = vsyncpa [#allocation3], 1
    %39 = vsyncpa [#allocation4], 1

</llo_original>
